<compile_context>
chip_gen: v5e
topology: v5e:2x2
jax: 0.10.0
libtpu: 0.0.40
codegen_flags: <defaults>
</compile_context>

<pallas_src>
import jax
import jax.numpy as jnp
from jax.experimental import pallas as pl
from jax.experimental.pallas import tpu as pltpu


def _mean_act_kernel(x_ref, o_ref):
    x = x_ref[...].astype(jnp.float32)          # explicit f32 compute (v5e)
    y = jnp.clip(jnp.exp(x), 1e-05, 1e06)       # EUP exp + VPU clamp
    o_ref[...] = y.astype(o_ref.dtype)


_TARGET_BLOCK_BYTES = 2 * 1024 * 1024  # ~2 MiB per block per buffer


def mean_act(x):
    """clamp(exp(x), 1e-5, 1e6) elementwise via a Pallas TPU kernel."""
    orig_shape = x.shape
    total = x.size
    if total == 0:
        return x

    flat = x.reshape(-1)

    # Lane-dense 2-D view: widest lane count (multiple of 128, up to 2048)
    # that divides the element count -> reshape is free, no padding copy.
    ln = 0
    for k in (16, 8, 4, 2, 1):               # 2048, 1024, 512, 256, 128 lanes
        if total % (128 * k) == 0:
            ln = 128 * k
            break
    pad = 0
    if ln == 0:
        # Odd element count (e.g. features like 200): pad only the flat tail
        # to the next multiple of 128 so stores stay unmasked.
        ln = 128
        pad = (-total) % ln
        flat = jnp.pad(flat, (0, pad))

    x2 = flat.reshape(-1, ln)
    rows = x2.shape[0]

    # Row-block size: ~2 MiB per block, multiple of 8 sublanes (or full extent
    # for small inputs). Ragged last block is handled by Pallas via cdiv grid.
    itemsize = jnp.dtype(x.dtype).itemsize
    bm = max(8, _TARGET_BLOCK_BYTES // (ln * itemsize))
    if bm >= rows:
        bm = rows
    else:
        bm = max(8, (bm // 8) * 8)

    grid = (pl.cdiv(rows, bm),)

    out2 = pl.pallas_call(
        _mean_act_kernel,
        out_shape=jax.ShapeDtypeStruct((rows, ln), x.dtype),
        grid=grid,
        in_specs=[pl.BlockSpec((bm, ln), lambda i: (i, 0))],
        out_specs=pl.BlockSpec((bm, ln), lambda i: (i, 0)),
        compiler_params=pltpu.CompilerParams(
            dimension_semantics=("parallel",),  # shards across v7x's 2 TCs
        ),
    )(x2)

    flat_out = out2.reshape(-1)
    if pad:
        flat_out = flat_out[:total]
    return flat_out.reshape(orig_shape)


# TODO(synk): in production, fuse the producing _dec_mean Linear (matmul+bias)
# into this kernel (or leave MeanAct to XLA fusion with its producer) to save
# one full HBM read of x; the rest of scDBEC.forward (encoder/decoder
# Linear+ReLU, soft_assign, DispAct, Sigmoid heads, ZINB/MMD losses) is plain
# dense algebra left to XLA.


if __name__ == "__main__":
    key = jax.random.PRNGKey(0)
    k1, k2 = jax.random.split(key)

    # (batch, features) consistent with scDBEC's _dec_mean output head.
    # Case 1: lane-friendly shape -> no-pad, lane-dense fast path.
    x1 = jax.random.normal(k1, (16, 256), dtype=jnp.float32) * 5.0
    # Case 2: getdims default feature count 200 -> tiny flat-tail-pad path.
    x2 = jax.random.normal(k2, (2, 200), dtype=jnp.float32) * 5.0

    ok = True
    for x in (x1, x2):
        y = jax.block_until_ready(mean_act(x))
        y_ref = jnp.clip(jnp.exp(x), 1e-05, 1e06)
        ok &= (y.shape == x.shape) and (y.dtype == x.dtype)
        ok &= bool(jnp.allclose(y, y_ref, rtol=1e-6, atol=1e-6))

    assert ok
    print("KERNEL_OK")
</pallas_src>

<mosaic_0001>
module attributes {stable_mosaic.version = 11 : i64} {
  func.func @_mean_act_kernel(%arg0: i32, %arg1: memref<2x2048xf32, #tpu.memory_space<vmem>>, %arg2: memref<2x2048xf32, #tpu.memory_space<vmem>>) attributes {dimension_semantics = [#tpu.dimension_semantics<parallel>], iteration_bounds = array<i64: 1>, scalar_prefetch = 0 : i64, scratch_operands = 0 : i64, tpu.core_type = #tpu.core_type<tc>, window_params = [{transform_indices = @transform_0, window_bounds = array<i64: 2, 2048>}, {transform_indices = @transform_1, window_bounds = array<i64: 2, 2048>}]} {
    %c0 = arith.constant 0 : index
    %c0_0 = arith.constant 0 : index
    %0 = vector.load %arg1[%c0, %c0_0] : memref<2x2048xf32, #tpu.memory_space<vmem>>, vector<2x2048xf32>
    %1 = math.exp %0 : vector<2x2048xf32>
    %cst = arith.constant 9.99999974E-6 : f32
    %cst_1 = arith.constant 1.000000e+06 : f32
    %2 = vector.broadcast %cst : f32 to vector<2x2048xf32>
    %3 = arith.maximumf %2, %1 : vector<2x2048xf32>
    %4 = vector.broadcast %cst_1 : f32 to vector<2x2048xf32>
    %5 = arith.minimumf %4, %3 : vector<2x2048xf32>
    %c0_2 = arith.constant 0 : index
    %c0_3 = arith.constant 0 : index
    %6 = vector.load %arg2[%c0_2, %c0_3] : memref<2x2048xf32, #tpu.memory_space<vmem>>, vector<2x2048xf32>
    tpu.vector_store %arg2[%c0_2, %c0_3], %5 {strides = array<i32>} : memref<2x2048xf32, #tpu.memory_space<vmem>>, vector<2x2048xf32>,
    return
  }
  func.func @transform_0(%arg0: i32) -> (i32, i32) {
    %c0_i32 = arith.constant 0 : i32
    %c0_i32_0 = arith.constant 0 : i32
    return %arg0, %c0_i32 : i32, i32
  }
  func.func @transform_1(%arg0: i32) -> (i32, i32) {
    %c0_i32 = arith.constant 0 : i32
    %c0_i32_0 = arith.constant 0 : i32
    return %arg0, %c0_i32 : i32, i32
  }
}

</mosaic_0001>

<llo_original>
// kernel: tpu_custom_call.1
$region0: #{tpu_custom_call.1}
  #allocation0 [shape = 'u32[]', space=smem, size = 0x4, offset = 0x4, fixed_abs, tag = 'smem constant byte address 0x4 - core index']
  #allocation1 [shape = 'u32[72,128]{1,0:T(1,128)}', space=vmem, size = 0x9000, scoped, tag = 'internal scratch']
  %s0 = inlined_call_operand.hbm [shape: f32[2,2048], index: 0, kind: input, shape index: {}]
  %s1 = inlined_call_operand.hbm [shape: f32[2,2048], index: 1, kind: output, shape index: {}]
  %s2 = sld [smem:[#allocation0]]
  $region18: #{tpu_custom_call.1} parent=0
    _
  %s4 = ssub.s32 1, %s2
  %s5 = scalar_select 0, %s4, %s2
  $region1: #{tpu_custom_call.1} parent=0
    #allocation2 [shape = 'u8[16384]{0}', space=vmem, size = 0x4000, scoped, tag = 'input window, operand 0, single buffered']
    #allocation3 [shape = 's32[1]{0}', space=sflag, size = 0x4, scoped, tag = 'scoped memory for tpu_custom_call.1']
    #allocation4 [shape = 's32[1]{0}', space=sflag, size = 0x4, scoped, tag = 'scoped memory for tpu_custom_call.1']
    #allocation5 [shape = 'u8[16384]{0}', space=vmem, size = 0x4000, scoped, tag = 'output window, operand 0, single buffered']
    %6 = vsyncpa [#allocation3], 0
    %7 = vsyncpa [#allocation4], 0
    // Predicated region
    $region2: #{tpu_custom_call.1} parent=1 // pred_check
      _
    $region3: #{tpu_custom_call.1} parent=1 // pred_check_branch
      %9 = sbr.rel (0) target = $region5
    $region4: #{tpu_custom_call.1} parent=1 // pred_region
      %11 = vsyncadd [#allocation3], 0
      %s13 = sshll.u32 %s0, 4
      %s14 = int_to_ptr.hbm [resolvable:$true] %s13
      %s15 = sshll.u32 [#allocation2], 4
      %s16 = int_to_ptr.vmem [resolvable:$true] %s15
      %18 = dma.hbm_to_vmem [thread:$0]  %s14, 512, %s16, [#allocation3]
    $region5: #{tpu_custom_call.1} parent=1 // pred_fallthru
      _
    // Predicated region
    $region6: #{tpu_custom_call.1} parent=1 // pred_check
      _
    $region7: #{tpu_custom_call.1} parent=1 // pred_check_branch
      %20 = sbr.rel (0) target = $region9
    $region8: #{tpu_custom_call.1} parent=1 // pred_region
      %22 = dma.done [#allocation3], 512
    $region9: #{tpu_custom_call.1} parent=1 // pred_fallthru
      _
    %v23 = vld [vmem:[#allocation2] sm:$0xff]
    %v24 = vld [vmem:[#allocation2 + $0x8] sm:$0xff]
    %v25 = vld [vmem:[#allocation2 + $0x10] sm:$0xff]
    %v26 = vld [vmem:[#allocation2 + $0x18] sm:$0xff]
    %v27 = vmul.f32 %v23, 1.442695
    %v28 = vpow.pop %v27
    %v29 = vmul.f32 %v24, 1.442695
    %v30 = vpow.pop %v29
    %v31 = vmul.f32 %v25, 1.442695
    %v32 = vpow.pop %v31
    %v33 = vmul.f32 %v26, 1.442695
    %v34 = vpow.pop %v33
    %v35 = vmax.f32 %v28, 1e-05
    %v36 = vmax.f32 %v30, 1e-05
    %v37 = vmax.f32 %v32, 1e-05
    %v38 = vmax.f32 %v34, 1e-05
    %v39 = vmin.f32 %v35, 1000000.0
    %v40 = vmin.f32 %v36, 1000000.0
    %v41 = vmin.f32 %v37, 1000000.0
    %v42 = vmin.f32 %v38, 1000000.0
    %43 = vst [vmem:[#allocation5] sm:$0xff] %v39
    %44 = vst [vmem:[#allocation5 + $0x8] sm:$0xff] %v40
    %45 = vst [vmem:[#allocation5 + $0x10] sm:$0xff] %v41
    %46 = vst [vmem:[#allocation5 + $0x18] sm:$0xff] %v42
    // Predicated region
    $region10: #{tpu_custom_call.1} parent=1 // pred_check
      _
    $region11: #{tpu_custom_call.1} parent=1 // pred_check_branch
      %48 = sbr.rel (0) target = $region13
    $region12: #{tpu_custom_call.1} parent=1 // pred_region
      %50 = vsyncadd [#allocation4], 0
      %s52 = sshll.u32 [#allocation5], 4
      %s53 = int_to_ptr.vmem [resolvable:$true] %s52
      %s54 = sshll.u32 %s1, 4
      %s55 = int_to_ptr.hbm [resolvable:$true] %s54
      %57 = dma.vmem_to_hbm [thread:$0]  %s53, 512, %s55, [#allocation4]
    $region13: #{tpu_custom_call.1} parent=1 // pred_fallthru
      _
    // Predicated region
    $region14: #{tpu_custom_call.1} parent=1 // pred_check
      _
    $region15: #{tpu_custom_call.1} parent=1 // pred_check_branch
      %59 = sbr.rel (0) target = $region17
    $region16: #{tpu_custom_call.1} parent=1 // pred_region
      %61 = dma.done [#allocation4], 512
    $region17: #{tpu_custom_call.1} parent=1 // pred_fallthru
      _
    %62 = vsyncpa [#allocation3], 1
    %63 = vsyncpa [#allocation4], 1

</llo_original>
